<compile_context>
chip_gen: v7x
topology: tpu7x:2x2x1
jax: 0.10.0
libtpu: 0.0.40
codegen_flags: <defaults>
</compile_context>

<pallas_src>
import functools

import jax
import jax.numpy as jnp
from jax.experimental import pallas as pl
from jax.experimental.pallas import tpu as pltpu


def _attention_unit_kernel(x_ref, s_ref, xw_ref, sw_ref, b_ref, ww_ref,
                           out_ref, *, tb, tp, att_dim, valid_t):
    # x_ref : (tb*tp, x_dim)   rows of x for this batch tile (batch-major)
    # s_ref : (tb, s_dim)      previous decoder states for this batch tile
    # xw_ref: (x_dim, att_dim) ; sw_ref: (s_dim, att_dim)
    # b_ref : (1, att_dim)     xb + sb pre-summed
    # ww_ref: (1, att_dim)     wEmbed weight as a row (wb dropped: softmax is
    #                          shift-invariant)
    # out_ref: (tb, tp)        attention weights, lane-dense (T on lanes)

    # Dominant GEMM for the whole batch tile at once.
    x_proj = jnp.dot(x_ref[...], xw_ref[...],
                     preferred_element_type=jnp.float32)            # (tb*tp, att)

    # State projection for the tb batch elements of this tile (bias folded in).
    s_proj = jnp.dot(s_ref[...], sw_ref[...],
                     preferred_element_type=jnp.float32) + b_ref[...]  # (tb, att)

    # Broadcast s_proj over the tp time positions of its batch element using a
    # one-hot expansion matmul: expand[r, c] = 1 iff row r belongs to batch c.
    # Run it in bf16 (one-hot is exact; s_proj rounding is ~1e-4 and vanishes
    # after tanh + the std=0.01 wEmbed reduction) to minimize MXU passes.
    rows = jax.lax.broadcasted_iota(jnp.int32, (tb * tp, tb), 0)
    cols = jax.lax.broadcasted_iota(jnp.int32, (tb * tp, tb), 1)
    expand = jnp.where((rows >= cols * tp) & (rows < (cols + 1) * tp),
                       1.0, 0.0).astype(jnp.bfloat16)               # (tb*tp, tb)
    s_bcast = jnp.dot(expand, s_proj.astype(jnp.bfloat16),
                      preferred_element_type=jnp.float32)           # (tb*tp, att)

    # tanh (EUP), then wEmbed as a VPU multiply (no N=1 MXU matmul).
    hw = jnp.tanh(x_proj + s_bcast) * ww_ref[...]                   # (tb*tp, att)

    # Regroup rows as (tb, tp, att) -- tile-aligned since tp % 8 == 0 -- and
    # lane-reduce att to get per-(batch, t) logits with T on the lane axis.
    v = jnp.sum(hw.reshape(tb, tp, att_dim), axis=-1)               # (tb, tp)

    if valid_t < tp:  # mask T-padding (static branch; only when T % 8 != 0)
        t_ids = jax.lax.broadcasted_iota(jnp.int32, (tb, tp), 1)
        v = jnp.where(t_ids < valid_t, v, -1e30)

    # Softmax over T along the lane axis; lane-dense (tb, tp) store.
    m = jnp.max(v, axis=-1, keepdims=True)                          # (tb, 1)
    e = jnp.exp(v - m)                                              # (tb, tp)
    denom = jnp.sum(e, axis=-1, keepdims=True)                      # (tb, 1)
    out_ref[...] = (e * pl.reciprocal(denom, approx=True)).astype(out_ref.dtype)


def _pick_batch_tile(batch, tp, target_rows=1024):
    """Pick TB with batch % TB == 0 and (TB % 8 == 0 or TB == batch).

    Prefers the largest TB with TB*tp <= target_rows (amortize per-step
    overhead); if no divisor fits (very large T), falls back to the smallest
    multiple-of-8 divisor to keep the VMEM footprint bounded.
    """
    if batch < 8 or batch * tp <= target_rows:
        return batch
    fits = None
    divisors8 = []
    for d in range(8, batch + 1, 8):
        if batch % d == 0:
            divisors8.append(d)
            if d * tp <= target_rows:
                fits = d          # keep the largest that fits
    if fits is not None:
        return fits
    return divisors8[0] if divisors8 else batch


def attention_unit_forward(x, s_prev, params, *, use_bf16_matmul=False):
    """x: (B, T, x_dim) f32, s_prev: (1, B, s_dim) f32 -> alpha: (B, T) f32."""
    B, T, x_dim = x.shape
    s_dim = s_prev.shape[-1]
    att_dim = params["xW"].shape[1]

    # Pad T to a sublane multiple so the in-kernel (TB*Tp, att)->(TB, Tp, att)
    # regroup is tile-aligned; padded positions are masked out of the softmax.
    Tp = ((T + 7) // 8) * 8
    x_in = x if Tp == T else jnp.pad(x, ((0, 0), (0, Tp - T), (0, 0)))

    TB = _pick_batch_tile(B, Tp)
    grid = (B // TB,)

    x2 = x_in.reshape(B * Tp, x_dim)                        # GEMM-shaped rows
    s2 = jnp.reshape(s_prev, (B, s_dim))                    # squeeze(0)
    bias = (params["xb"] + params["sb"]).reshape(1, att_dim)  # pre-summed
    ww_row = params["wW"].reshape(1, att_dim)               # (att_dim, 1) -> row
    xw = params["xW"]
    if use_bf16_matmul:  # halve HBM traffic of the dominant streamed operand
        x2 = x2.astype(jnp.bfloat16)
        xw = xw.astype(jnp.bfloat16)

    kernel = functools.partial(_attention_unit_kernel, tb=TB, tp=Tp,
                               att_dim=att_dim, valid_t=T)

    cost = pl.CostEstimate(
        flops=(2 * B * Tp * x_dim * att_dim + 2 * B * s_dim * att_dim
               + 2 * B * Tp * TB * att_dim + 4 * B * Tp * att_dim),
        transcendentals=B * Tp * att_dim + B * Tp,
        bytes_accessed=(x2.size * x2.dtype.itemsize
                        + xw.size * xw.dtype.itemsize
                        + 4 * (B * s_dim + s_dim * att_dim + 2 * att_dim
                               + B * Tp)),
    )

    out = pl.pallas_call(
        kernel,
        out_shape=jax.ShapeDtypeStruct((B, Tp), jnp.float32),
        grid=grid,
        in_specs=[
            pl.BlockSpec((TB * Tp, x_dim), lambda i: (i, 0)),   # x rows
            pl.BlockSpec((TB, s_dim), lambda i: (i, 0)),        # s_prev
            pl.BlockSpec((x_dim, att_dim), lambda i: (0, 0)),   # xW
            pl.BlockSpec((s_dim, att_dim), lambda i: (0, 0)),   # sW
            pl.BlockSpec((1, att_dim), lambda i: (0, 0)),       # xb + sb
            pl.BlockSpec((1, att_dim), lambda i: (0, 0)),       # wW row
        ],
        out_specs=pl.BlockSpec((TB, Tp), lambda i: (i, 0)),
        compiler_params=pltpu.CompilerParams(
            dimension_semantics=("parallel",)),
        cost_estimate=cost,
    )(x2, s2, xw, params["sW"], bias, ww_row)

    return out[:, :T] if Tp != T else out


def init_params(key, s_dim, x_dim, att_dim):
    """Matches the PyTorch module init: normal(std=0.01) weights, zero biases.
    Weights stored transposed ((in, out)) relative to nn.Linear."""
    k1, k2, k3 = jax.random.split(key, 3)
    return {
        "sW": 0.01 * jax.random.normal(k1, (s_dim, att_dim), jnp.float32),
        "sb": jnp.zeros((att_dim,), jnp.float32),
        "xW": 0.01 * jax.random.normal(k2, (x_dim, att_dim), jnp.float32),
        "xb": jnp.zeros((att_dim,), jnp.float32),
        "wW": 0.01 * jax.random.normal(k3, (att_dim, 1), jnp.float32),
        "wb": jnp.zeros((1,), jnp.float32),
    }


def _reference_forward(x, s_prev, params):
    """Pure-JAX reference reproducing the PyTorch semantics."""
    x_proj = x @ params["xW"] + params["xb"]                    # (B, T, att)
    s = jnp.squeeze(s_prev, axis=0)                             # (B, s_dim)
    s_proj = (s @ params["sW"] + params["sb"])[:, None, :]      # (B, 1, att)
    summed = jnp.tanh(s_proj + x_proj)                          # (B, T, att)
    v = (summed @ params["wW"])[..., 0] + params["wb"][0]       # (B, T)
    return jax.nn.softmax(v, axis=1)


if __name__ == "__main__":
    B, T = 2, 8
    s_dim, x_dim, att_dim = 32, 32, 32

    key = jax.random.PRNGKey(0)
    kp, kx, ks = jax.random.split(key, 3)

    params = init_params(kp, s_dim, x_dim, att_dim)
    x = jax.random.normal(kx, (B, T, x_dim), jnp.float32)
    s_prev = jax.random.normal(ks, (1, B, s_dim), jnp.float32)

    alpha = attention_unit_forward(x, s_prev, params)
    alpha = jax.block_until_ready(alpha)

    ref = _reference_forward(x, s_prev, params)
    assert alpha.shape == (B, T)
    # pl.reciprocal(approx=True) + bf16 s-broadcast matmul -> modest tol.
    assert jnp.allclose(alpha, ref, atol=2e-3, rtol=2e-3)
    assert jnp.allclose(jnp.sum(alpha, axis=1), jnp.ones((B,)), atol=2e-3)

    print("KERNEL_OK")
</pallas_src>

<mosaic_0001>
module attributes {stable_mosaic.version = 11 : i64} {
  func.func @_attention_unit_kernel(%arg0: i32, %arg1: memref<16x32xf32, #tpu.memory_space<vmem>>, %arg2: memref<2x32xf32, #tpu.memory_space<vmem>>, %arg3: memref<32x32xf32, #tpu.memory_space<vmem>>, %arg4: memref<32x32xf32, #tpu.memory_space<vmem>>, %arg5: memref<1x32xf32, #tpu.memory_space<vmem>>, %arg6: memref<1x32xf32, #tpu.memory_space<vmem>>, %arg7: memref<2x8xf32, #tpu.memory_space<vmem>>) attributes {dimension_semantics = [#tpu.dimension_semantics<parallel>], iteration_bounds = array<i64: 1>, scalar_prefetch = 0 : i64, scratch_operands = 0 : i64, tpu.core_type = #tpu.core_type<tc>, window_params = [{transform_indices = @transform_0, window_bounds = array<i64: 16, 32>}, {transform_indices = @transform_1, window_bounds = array<i64: 2, 32>}, {pipeline_mode = #tpu.pipeline_mode<synchronous>, transform_indices = @transform_2, window_bounds = array<i64: 32, 32>}, {pipeline_mode = #tpu.pipeline_mode<synchronous>, transform_indices = @transform_3, window_bounds = array<i64: 32, 32>}, {pipeline_mode = #tpu.pipeline_mode<synchronous>, transform_indices = @transform_4, window_bounds = array<i64: 1, 32>}, {pipeline_mode = #tpu.pipeline_mode<synchronous>, transform_indices = @transform_5, window_bounds = array<i64: 1, 32>}, {transform_indices = @transform_6, window_bounds = array<i64: 2, 8>}]} {
    %c0 = arith.constant 0 : index
    %c0_0 = arith.constant 0 : index
    %0 = vector.load %arg1[%c0, %c0_0] : memref<16x32xf32, #tpu.memory_space<vmem>>, vector<16x32xf32>
    %c0_1 = arith.constant 0 : index
    %c0_2 = arith.constant 0 : index
    %1 = vector.load %arg3[%c0_1, %c0_2] : memref<32x32xf32, #tpu.memory_space<vmem>>, vector<32x32xf32>
    %cst = arith.constant dense<0.000000e+00> : vector<16x32xf32>
    %2 = tpu.matmul %0, %1, %cst {dimension_numbers = #tpu.dot_dimension_numbers<[1], [0], [0], [1], [0, 0, 1, 1], [], []>} : vector<16x32xf32>, vector<32x32xf32>, vector<16x32xf32> -> vector<16x32xf32>
    %c0_3 = arith.constant 0 : index
    %c0_4 = arith.constant 0 : index
    %3 = vector.load %arg2[%c0_3, %c0_4] : memref<2x32xf32, #tpu.memory_space<vmem>>, vector<2x32xf32>
    %c0_5 = arith.constant 0 : index
    %c0_6 = arith.constant 0 : index
    %4 = vector.load %arg4[%c0_5, %c0_6] : memref<32x32xf32, #tpu.memory_space<vmem>>, vector<32x32xf32>
    %cst_7 = arith.constant dense<0.000000e+00> : vector<2x32xf32>
    %5 = tpu.matmul %3, %4, %cst_7 {dimension_numbers = #tpu.dot_dimension_numbers<[1], [0], [0], [1], [0, 0, 1, 1], [], []>} : vector<2x32xf32>, vector<32x32xf32>, vector<2x32xf32> -> vector<2x32xf32>
    %c0_8 = arith.constant 0 : index
    %c0_9 = arith.constant 0 : index
    %6 = vector.load %arg5[%c0_8, %c0_9] : memref<1x32xf32, #tpu.memory_space<vmem>>, vector<1x32xf32>
    %7 = vector.broadcast %6 : vector<1x32xf32> to vector<2x32xf32>
    %8 = arith.addf %5, %7 : vector<2x32xf32>
    %9 = tpu.iota {dimensions = array<i32: 0>} : vector<16x2xi32>
    %10 = tpu.iota {dimensions = array<i32: 1>} : vector<16x2xi32>
    %c8_i32 = arith.constant 8 : i32
    %11 = vector.broadcast %c8_i32 : i32 to vector<16x2xi32>
    %12 = arith.muli %10, %11 : vector<16x2xi32>
    %13 = arith.cmpi sge, %9, %12 : vector<16x2xi32>
    %c1_i32 = arith.constant 1 : i32
    %14 = vector.broadcast %c1_i32 : i32 to vector<16x2xi32>
    %15 = arith.addi %10, %14 : vector<16x2xi32>
    %c8_i32_10 = arith.constant 8 : i32
    %16 = vector.broadcast %c8_i32_10 : i32 to vector<16x2xi32>
    %17 = arith.muli %15, %16 : vector<16x2xi32>
    %18 = arith.cmpi slt, %9, %17 : vector<16x2xi32>
    %19 = arith.andi %13, %18 : vector<16x2xi1>
    %cst_11 = arith.constant 1.000000e+00 : f32
    %cst_12 = arith.constant 0.000000e+00 : f32
    %20 = vector.broadcast %cst_11 : f32 to vector<16x2xf32>
    %21 = vector.broadcast %cst_12 : f32 to vector<16x2xf32>
    %22 = arith.select %19, %20, %21 : vector<16x2xi1>, vector<16x2xf32>
    %23 = arith.truncf %22 : vector<16x2xf32> to vector<16x2xbf16>
    %24 = arith.truncf %8 : vector<2x32xf32> to vector<2x32xbf16>
    %cst_13 = arith.constant dense<0.000000e+00> : vector<16x32xf32>
    %25 = tpu.matmul %23, %24, %cst_13 {dimension_numbers = #tpu.dot_dimension_numbers<[1], [0], [0], [1], [0, 0, 1, 1], [], []>} : vector<16x2xbf16>, vector<2x32xbf16>, vector<16x32xf32> -> vector<16x32xf32>
    %26 = arith.addf %2, %25 : vector<16x32xf32>
    %27 = math.tanh %26 : vector<16x32xf32>
    %c0_14 = arith.constant 0 : index
    %c0_15 = arith.constant 0 : index
    %28 = vector.load %arg6[%c0_14, %c0_15] : memref<1x32xf32, #tpu.memory_space<vmem>>, vector<1x32xf32>
    %29 = vector.broadcast %28 : vector<1x32xf32> to vector<16x32xf32>
    %30 = arith.mulf %27, %29 : vector<16x32xf32>
    %31 = vector.shape_cast %30 : vector<16x32xf32> to vector<2x8x32xf32>
    %cst_16 = arith.constant dense<0.000000e+00> : vector<2x8xf32>
    %32 = vector.multi_reduction <add>, %31, %cst_16 [2] : vector<2x8x32xf32> to vector<2x8xf32>
    %cst_17 = arith.constant dense<0xFF800000> : vector<2xf32>
    %33 = vector.multi_reduction <maximumf>, %32, %cst_17 [1] : vector<2x8xf32> to vector<2xf32>
    %34 = vector.shape_cast %33 : vector<2xf32> to vector<2x1xf32>
    %35 = vector.broadcast %34 : vector<2x1xf32> to vector<2x8xf32>
    %36 = arith.subf %32, %35 : vector<2x8xf32>
    %37 = math.exp %36 : vector<2x8xf32>
    %cst_18 = arith.constant dense<0.000000e+00> : vector<2xf32>
    %38 = vector.multi_reduction <add>, %37, %cst_18 [1] : vector<2x8xf32> to vector<2xf32>
    %39 = vector.shape_cast %38 : vector<2xf32> to vector<2x1xf32>
    %40 = tpu.reciprocal %39 {approx = true} : vector<2x1xf32> -> vector<2x1xf32>
    %41 = vector.broadcast %40 : vector<2x1xf32> to vector<2x8xf32>
    %42 = arith.mulf %37, %41 : vector<2x8xf32>
    %c0_19 = arith.constant 0 : index
    %c0_20 = arith.constant 0 : index
    %43 = vector.load %arg7[%c0_19, %c0_20] : memref<2x8xf32, #tpu.memory_space<vmem>>, vector<2x8xf32>
    tpu.vector_store %arg7[%c0_19, %c0_20], %42 {strides = array<i32>} : memref<2x8xf32, #tpu.memory_space<vmem>>, vector<2x8xf32>,
    return
  }
  func.func @transform_0(%arg0: i32) -> (i32, i32) {
    %c0_i32 = arith.constant 0 : i32
    %c0_i32_0 = arith.constant 0 : i32
    return %arg0, %c0_i32 : i32, i32
  }
  func.func @transform_1(%arg0: i32) -> (i32, i32) {
    %c0_i32 = arith.constant 0 : i32
    %c0_i32_0 = arith.constant 0 : i32
    return %arg0, %c0_i32 : i32, i32
  }
  func.func @transform_2(%arg0: i32) -> (i32, i32) {
    %c0_i32 = arith.constant 0 : i32
    %c0_i32_0 = arith.constant 0 : i32
    %c0_i32_1 = arith.constant 0 : i32
    return %c0_i32, %c0_i32_0 : i32, i32
  }
  func.func @transform_3(%arg0: i32) -> (i32, i32) {
    %c0_i32 = arith.constant 0 : i32
    %c0_i32_0 = arith.constant 0 : i32
    %c0_i32_1 = arith.constant 0 : i32
    return %c0_i32, %c0_i32_0 : i32, i32
  }
  func.func @transform_4(%arg0: i32) -> (i32, i32) {
    %c0_i32 = arith.constant 0 : i32
    %c0_i32_0 = arith.constant 0 : i32
    %c0_i32_1 = arith.constant 0 : i32
    return %c0_i32, %c0_i32_0 : i32, i32
  }
  func.func @transform_5(%arg0: i32) -> (i32, i32) {
    %c0_i32 = arith.constant 0 : i32
    %c0_i32_0 = arith.constant 0 : i32
    %c0_i32_1 = arith.constant 0 : i32
    return %c0_i32, %c0_i32_0 : i32, i32
  }
  func.func @transform_6(%arg0: i32) -> (i32, i32) {
    %c0_i32 = arith.constant 0 : i32
    %c0_i32_0 = arith.constant 0 : i32
    return %arg0, %c0_i32 : i32, i32
  }
}

</mosaic_0001>

<llo_original>
// kernel: tpu_custom_call.1
$region0: #{tpu_custom_call.1}
  #allocation0 [shape = 'u32[]', space=smem, size = 0x4, offset = 0x4, fixed_abs, tag = 'smem constant byte address 0x4 - core index']
  #allocation1 [shape = 'u32[144,128]{1,0:T(1,128)}', space=vmem, size = 0x12000, scoped, tag = 'internal scratch']
  %s0 = inlined_call_operand.hbm [shape: f32[16,32], index: 0, kind: input, shape index: {}]
  %s1 = inlined_call_operand.vmem [shape: f32[2,32], index: 1, kind: input, shape index: {}]
  %s2 = inlined_call_operand.hbm [shape: f32[32,32], index: 2, kind: input, shape index: {}]
  %s3 = inlined_call_operand.hbm [shape: f32[32,32], index: 3, kind: input, shape index: {}]
  %s4 = inlined_call_operand.vmem [shape: f32[1,32], index: 4, kind: input, shape index: {}]
  %s5 = inlined_call_operand.vmem [shape: f32[1,32], index: 5, kind: input, shape index: {}]
  %s6 = inlined_call_operand.hbm [shape: f32[2,8], index: 6, kind: output, shape index: {}]
  %s7 = sld [smem:[#allocation0]]
  $region46: #{tpu_custom_call.1} parent=0
    _
  %s9 = ssub.s32 1, %s7
  %s10 = scalar_select 0, %s9, %s7
  $region1: #{tpu_custom_call.1} parent=0
    #allocation2 [shape = 'u8[8192]{0}', space=vmem, size = 0x2000, scoped, tag = 'input window, operand 0, single buffered']
    #allocation3 [shape = 's32[1]{0}', space=sflag, size = 0x4, scoped, tag = 'scoped memory for tpu_custom_call.1']
    #allocation4 [shape = 's32[1]{0}', space=sflag, size = 0x4, scoped, tag = 'scoped memory for tpu_custom_call.1']
    #allocation5 [shape = 'u8[16384]{0}', space=vmem, size = 0x4000, scoped, tag = 'input window, operand 2, single buffered']
    #allocation6 [shape = 's32[1]{0}', space=sflag, size = 0x4, scoped, tag = 'scoped memory for tpu_custom_call.1']
    #allocation7 [shape = 'u8[16384]{0}', space=vmem, size = 0x4000, scoped, tag = 'input window, operand 3, single buffered']
    #allocation8 [shape = 'u8[1024]{0}', space=vmem, size = 0x400, scoped, tag = 'output window, operand 0, single buffered']
    %11 = vsyncpa [#allocation3], 0
    %12 = vsyncpa [#allocation6], 0
    %13 = vsyncpa [#allocation4], 0
    // Predicated region
    $region2: #{tpu_custom_call.1} parent=1 // pred_check
      _
    $region3: #{tpu_custom_call.1} parent=1 // pred_check_branch
      %15 = sbr.rel (0) target = $region5
    $region4: #{tpu_custom_call.1} parent=1 // pred_region
      %s17 = ssub.s32 256, 256
      %18 = vsyncadd [#allocation3], %s17
      %s19 = sshll.u32 [#allocation2], 4
      %s20 = int_to_ptr.vmem [resolvable:$true] %s19
      %25 = dma.hbm_to_vmem [thread:$0]  %s0, 256, %s20, [#allocation3], 128, 128, 8
    $region5: #{tpu_custom_call.1} parent=1 // pred_fallthru
      _
    // Predicated region
    $region6: #{tpu_custom_call.1} parent=1 // pred_check
      _
    $region7: #{tpu_custom_call.1} parent=1 // pred_check_branch
      %27 = sbr.rel (0) target = $region9
    $region8: #{tpu_custom_call.1} parent=1 // pred_region
      _
    $region9: #{tpu_custom_call.1} parent=1 // pred_fallthru
      _
    // Predicated region
    $region10: #{tpu_custom_call.1} parent=1 // pred_check
      _
    $region11: #{tpu_custom_call.1} parent=1 // pred_check_branch
      %29 = sbr.rel (0) target = $region13
    $region12: #{tpu_custom_call.1} parent=1 // pred_region
      %s31 = ssub.s32 512, 512
      %32 = vsyncadd [#allocation6], %s31
      %s33 = sshll.u32 [#allocation5], 4
      %s34 = int_to_ptr.vmem [resolvable:$true] %s33
      %39 = dma.hbm_to_vmem [thread:$0]  %s2, 512, %s34, [#allocation6], 128, 128, 8
    $region13: #{tpu_custom_call.1} parent=1 // pred_fallthru
      _
    // Predicated region
    $region14: #{tpu_custom_call.1} parent=1 // pred_check
      _
    $region15: #{tpu_custom_call.1} parent=1 // pred_check_branch
      %41 = sbr.rel (0) target = $region17
    $region16: #{tpu_custom_call.1} parent=1 // pred_region
      %s43 = ssub.s32 512, 512
      %44 = vsyncadd [#allocation6], %s43
      %s45 = sshll.u32 [#allocation7], 4
      %s46 = int_to_ptr.vmem [resolvable:$true] %s45
      %51 = dma.hbm_to_vmem [thread:$0]  %s3, 512, %s46, [#allocation6], 128, 128, 8
    $region17: #{tpu_custom_call.1} parent=1 // pred_fallthru
      _
    // Predicated region
    $region18: #{tpu_custom_call.1} parent=1 // pred_check
      _
    $region19: #{tpu_custom_call.1} parent=1 // pred_check_branch
      %53 = sbr.rel (0) target = $region21
    $region20: #{tpu_custom_call.1} parent=1 // pred_region
      _
    $region21: #{tpu_custom_call.1} parent=1 // pred_fallthru
      _
    // Predicated region
    $region22: #{tpu_custom_call.1} parent=1 // pred_check
      _
    $region23: #{tpu_custom_call.1} parent=1 // pred_check_branch
      %55 = sbr.rel (0) target = $region25
    $region24: #{tpu_custom_call.1} parent=1 // pred_region
      _
    $region25: #{tpu_custom_call.1} parent=1 // pred_fallthru
      _
    // Predicated region
    $region26: #{tpu_custom_call.1} parent=1 // pred_check
      _
    $region27: #{tpu_custom_call.1} parent=1 // pred_check_branch
      %57 = sbr.rel (0) target = $region29
    $region28: #{tpu_custom_call.1} parent=1 // pred_region
      %58 = dma.done [#allocation3], 256
    $region29: #{tpu_custom_call.1} parent=1 // pred_fallthru
      _
    // Predicated region
    $region30: #{tpu_custom_call.1} parent=1 // pred_check
      _
    $region31: #{tpu_custom_call.1} parent=1 // pred_check_branch
      %60 = sbr.rel (0) target = $region33
    $region32: #{tpu_custom_call.1} parent=1 // pred_region
      %61 = dma.done [#allocation6], 512
    $region33: #{tpu_custom_call.1} parent=1 // pred_fallthru
      _
    // Predicated region
    $region34: #{tpu_custom_call.1} parent=1 // pred_check
      _
    $region35: #{tpu_custom_call.1} parent=1 // pred_check_branch
      %63 = sbr.rel (0) target = $region37
    $region36: #{tpu_custom_call.1} parent=1 // pred_region
      %64 = dma.done [#allocation6], 512
    $region37: #{tpu_custom_call.1} parent=1 // pred_fallthru
      _
    %v66 = vld [vmem:[#allocation2] sm:$0xff]
    %v67 = vld [vmem:[#allocation2 + $0x8] sm:$0xff]
    %v68 = vld [vmem:[#allocation5] sm:$0xff]
    %v69 = vld [vmem:[#allocation5 + $0x8] sm:$0xff]
    %v70 = vld [vmem:[#allocation5 + $0x10] sm:$0xff]
    %v71 = vld [vmem:[#allocation5 + $0x18] sm:$0xff]
    %v72 = vld [vmem:[%s1] sm:$0x3]
    %v73 = vld [vmem:[#allocation7] sm:$0xff]
    %v74 = vld [vmem:[#allocation7 + $0x8] sm:$0xff]
    %v75 = vld [vmem:[#allocation7 + $0x10] sm:$0xff]
    %v76 = vld [vmem:[#allocation7 + $0x18] sm:$0xff]
    %v77 = vld [vmem:[%s4] sm:$0x1]
    %v79 = vlaneseq
    %v80 = vshrl.u32 %v79, 7
    %v81 = vsub.s32 0, %v80
    %v82 = vrot.slane %v77, %v81
    %vm84 = vcmask 261120
    %v86 = vsel %vm84, %v72, 0
    %88 = vmatprep.subr.mxu0 0.0
    %89 = vmatpush1.msra.mxu0 %v73
    %90 = vmatprep.subr.mxu0 0.0
    %91 = vmatpush1.msra.mxu0 %v74
    %92 = vmatprep.subr.mxu0 0.0
    %93 = vmatpush1.msra.mxu0 %v75
    %94 = vmatprep.subr.mxu0 0.0
    %95 = vmatpush1.msra.mxu0 %v76
    %96 = vmatprep.subr.mxu0 0.0
    %97 = vmatpush1.msra.mxu0 0.0
    %98 = vmatprep.subr.mxu0 0.0
    %99 = vmatpush1.msra.mxu0 0.0
    %100 = vmatprep.subr.mxu0 0.0
    %101 = vmatpush1.msra.mxu0 0.0
    %102 = vmatprep.subr.mxu0 0.0
    %103 = vmatpush1.msra.mxu0 0.0
    %104 = vmatprep.subr.mxu0 0.0
    %105 = vmatpush1.msra.mxu0 0.0
    %106 = vmatprep.subr.mxu0 0.0
    %107 = vmatpush1.msra.mxu0 0.0
    %108 = vmatprep.subr.mxu0 0.0
    %109 = vmatpush1.msra.mxu0 0.0
    %110 = vmatprep.subr.mxu0 0.0
    %111 = vmatpush1.msra.mxu0 0.0
    %112 = vmatprep.subr.mxu0 0.0
    %113 = vmatpush1.msra.mxu0 0.0
    %114 = vmatprep.subr.mxu0 0.0
    %115 = vmatpush1.msra.mxu0 0.0
    %116 = vmatprep.subr.mxu0 0.0
    %117 = vmatpush1.msra.mxu0 0.0
    %118 = vmatprep.subr.mxu0 0.0
    %119 = vmatpush1.msra.mxu0 0.0
    %120 = vmatprep.subr.mxu0 0.0
    %121 = vmatpush1.msra.mxu0 0.0
    %122 = vmatprep.subr.mxu0 0.0
    %123 = vmatpush1.msra.mxu0 0.0
    %124 = vmatprep.subr.mxu0 0.0
    %125 = vmatpush1.msra.mxu0 0.0
    %126 = vmatprep.subr.mxu0 0.0
    %127 = vmatpush1.msra.mxu0 0.0
    %128 = vmatprep.subr.mxu0 0.0
    %129 = vmatpush1.msra.mxu0 0.0
    %130 = vmatprep.subr.mxu0 0.0
    %131 = vmatpush1.msra.mxu0 0.0
    %132 = vmatprep.subr.mxu0 0.0
    %133 = vmatpush1.msra.mxu0 0.0
    %134 = vmatprep.subr.mxu0 0.0
    %135 = vmatpush1.msra.mxu0 0.0
    %136 = vmatprep.subr.mxu0 0.0
    %137 = vmatpush1.msra.mxu0 0.0
    %138 = vmatprep.subr.mxu0 0.0
    %139 = vmatpush1.msra.mxu0 0.0
    %140 = vmatprep.subr.mxu0 0.0
    %141 = vmatpush1.msra.mxu0 0.0
    %142 = vmatprep.subr.mxu0 0.0
    %143 = vmatpush1.msra.mxu0 0.0
    %144 = vmatprep.subr.mxu0 0.0
    %145 = vmatpush1.msra.mxu0 0.0
    %146 = vmatprep.subr.mxu0 0.0
    %147 = vmatpush1.msra.mxu0 0.0
    %148 = vmatprep.subr.mxu0 0.0
    %149 = vmatpush1.msra.mxu0 0.0
    %150 = vmatprep.subr.mxu0 0.0
    %151 = vmatpush1.msra.mxu0 0.0
    %152 = vmatprep.mubr.f32.mxu0 0.0
    %153 = vmatmul.mubr.f32.gmra.mrb[0].mxu0 %v86
    %v154 = vpop.f32.mrb[0].mxu0
    %v155 = vadd.f32 %v82, %v154
    %v156 = vpop.f32.mrb[0].mxu0
    %157 = vdwg.mxu0
    %v158 = vlaneseq
    %v159 = vshrl.u32 %v158, 7
    %v160 = vadd.s32 %v159, 8
    %v161 = vlaneseq
    %v162 = vand.u32 %v161, 127
    %v163 = vmul.u32 %v162, 8
    %vm164 = vcmp.ge.s32.totalorder %v159, %v163
    %vm165 = vcmp.ge.s32.totalorder %v160, %v163
    %v166 = vadd.s32 %v162, 1
    %v167 = vmul.u32 %v166, 8
    %vm168 = vcmp.lt.s32.totalorder %v159, %v167
    %vm169 = vcmp.lt.s32.totalorder %v160, %v167
    %vm170 = vmand %vm164, %vm168
    %vm171 = vmand %vm165, %vm169
    %v172 = vsel %vm170, 1.0, 0.0
    %v173 = vsel %vm171, 1.0, 0.0
    %v174 = vpack.c.bf16 %v173, %v172
    %v175 = vpack.c.bf16 %v155, %v155
    %vm176 = vcmask 15360
    %v178 = vsel %vm176, %v174, 0
    %vm180 = vcmask 1040384
    %v182 = vsel %vm180, %v175, 0
    %184 = vmatprep.subr.bf16.mxu0 0
    %185 = vmatpush1.bf16.msra.mxu0 %v182
    %186 = vmatprep.subr.bf16.mxu0 0
    %187 = vmatpush1.bf16.msra.mxu0 0
    %188 = vmatprep.subr.bf16.mxu0 0
    %189 = vmatpush1.bf16.msra.mxu0 0
    %190 = vmatprep.subr.bf16.mxu0 0
    %191 = vmatpush1.bf16.msra.mxu0 0
    %192 = vmatprep.subr.bf16.mxu0 0
    %193 = vmatpush1.bf16.msra.mxu0 0
    %194 = vmatprep.subr.bf16.mxu0 0
    %195 = vmatpush1.bf16.msra.mxu0 0
    %196 = vmatprep.subr.bf16.mxu0 0
    %197 = vmatpush1.bf16.msra.mxu0 0
    %198 = vmatprep.subr.bf16.mxu0 0
    %199 = vmatpush1.bf16.msra.mxu0 0
    %200 = vmatprep.subr.bf16.mxu0 0
    %201 = vmatpush1.bf16.msra.mxu0 0
    %202 = vmatprep.subr.bf16.mxu0 0
    %203 = vmatpush1.bf16.msra.mxu0 0
    %204 = vmatprep.subr.bf16.mxu0 0
    %205 = vmatpush1.bf16.msra.mxu0 0
    %206 = vmatprep.subr.bf16.mxu0 0
    %207 = vmatpush1.bf16.msra.mxu0 0
    %208 = vmatprep.subr.bf16.mxu0 0
    %209 = vmatpush1.bf16.msra.mxu0 0
    %210 = vmatprep.subr.bf16.mxu0 0
    %211 = vmatpush1.bf16.msra.mxu0 0
    %212 = vmatprep.subr.bf16.mxu0 0
    %213 = vmatpush1.bf16.msra.mxu0 0
    %214 = vmatprep.subr.bf16.mxu0 0
    %215 = vmatpush1.bf16.msra.mxu0 0
    %216 = vmatprep.mubr.bf16.mxu0 0
    %217 = vmatmul.mubr.bf16.gmra.mrb[0].mxu0 %v178
    %v218 = vpop.f32.mrb[0].mxu0
    %v219 = vadd.f32 0.0, %v218
    %v220 = vpop.f32.mrb[0].mxu0
    %v221 = vpop.f32.mrb[0].mxu0
    %v222 = vadd.f32 0.0, %v221
    %v223 = vpop.f32.mrb[0].mxu0
    %224 = vdwg.mxu0
    %v226 = vsel %vm84, %v66, 0
    %v229 = vsel %vm84, %v67, 0
    %231 = vmatprep.subr.mxu0 0.0
    %232 = vmatpush1.msra.mxu0 %v68
    %233 = vmatprep.subr.mxu0 0.0
    %234 = vmatpush1.msra.mxu0 %v69
    %235 = vmatprep.subr.mxu0 0.0
    %236 = vmatpush1.msra.mxu0 %v70
    %237 = vmatprep.subr.mxu0 0.0
    %238 = vmatpush1.msra.mxu0 %v71
    %239 = vmatprep.subr.mxu0 0.0
    %240 = vmatpush1.msra.mxu0 0.0
    %241 = vmatprep.subr.mxu0 0.0
    %242 = vmatpush1.msra.mxu0 0.0
    %243 = vmatprep.subr.mxu0 0.0
    %244 = vmatpush1.msra.mxu0 0.0
    %245 = vmatprep.subr.mxu0 0.0
    %246 = vmatpush1.msra.mxu0 0.0
    %247 = vmatprep.subr.mxu0 0.0
    %248 = vmatpush1.msra.mxu0 0.0
    %249 = vmatprep.subr.mxu0 0.0
    %250 = vmatpush1.msra.mxu0 0.0
    %251 = vmatprep.subr.mxu0 0.0
    %252 = vmatpush1.msra.mxu0 0.0
    %253 = vmatprep.subr.mxu0 0.0
    %254 = vmatpush1.msra.mxu0 0.0
    %255 = vmatprep.subr.mxu0 0.0
    %256 = vmatpush1.msra.mxu0 0.0
    %257 = vmatprep.subr.mxu0 0.0
    %258 = vmatpush1.msra.mxu0 0.0
    %259 = vmatprep.subr.mxu0 0.0
    %260 = vmatpush1.msra.mxu0 0.0
    %261 = vmatprep.subr.mxu0 0.0
    %262 = vmatpush1.msra.mxu0 0.0
    %263 = vmatprep.subr.mxu0 0.0
    %264 = vmatpush1.msra.mxu0 0.0
    %265 = vmatprep.subr.mxu0 0.0
    %266 = vmatpush1.msra.mxu0 0.0
    %267 = vmatprep.subr.mxu0 0.0
    %268 = vmatpush1.msra.mxu0 0.0
    %269 = vmatprep.subr.mxu0 0.0
    %270 = vmatpush1.msra.mxu0 0.0
    %271 = vmatprep.subr.mxu0 0.0
    %272 = vmatpush1.msra.mxu0 0.0
    %273 = vmatprep.subr.mxu0 0.0
    %274 = vmatpush1.msra.mxu0 0.0
    %275 = vmatprep.subr.mxu0 0.0
    %276 = vmatpush1.msra.mxu0 0.0
    %277 = vmatprep.subr.mxu0 0.0
    %278 = vmatpush1.msra.mxu0 0.0
    %279 = vmatprep.subr.mxu0 0.0
    %280 = vmatpush1.msra.mxu0 0.0
    %281 = vmatprep.subr.mxu0 0.0
    %282 = vmatpush1.msra.mxu0 0.0
    %283 = vmatprep.subr.mxu0 0.0
    %284 = vmatpush1.msra.mxu0 0.0
    %285 = vmatprep.subr.mxu0 0.0
    %286 = vmatpush1.msra.mxu0 0.0
    %287 = vmatprep.subr.mxu0 0.0
    %288 = vmatpush1.msra.mxu0 0.0
    %289 = vmatprep.subr.mxu0 0.0
    %290 = vmatpush1.msra.mxu0 0.0
    %291 = vmatprep.subr.mxu0 0.0
    %292 = vmatpush1.msra.mxu0 0.0
    %293 = vmatprep.subr.mxu0 0.0
    %294 = vmatpush1.msra.mxu0 0.0
    %295 = vmatprep.mubr.f32.mxu0 0.0
    %296 = vmatmul.mubr.f32.gmra.mrb[0].mxu0 %v226
    %v297 = vpop.f32.mrb[0].mxu0
    %v298 = vadd.f32 %v219, %v297
    %v299 = vpop.f32.mrb[0].mxu0
    %300 = vmatprep.mubr.f32.mxu0 0.0
    %301 = vmatmul.mubr.f32.gmra.mrb[0].mxu0 %v229
    %v302 = vpop.f32.mrb[0].mxu0
    %v303 = vadd.f32 %v222, %v302
    %v304 = vpop.f32.mrb[0].mxu0
    %305 = vdwg.mxu0
    %v306 = vtanh.pop %v298
    %v307 = vtanh.pop %v303
    %v308 = vld [vmem:[%s5] sm:$0x1]
    %v310 = vlaneseq
    %v311 = vshrl.u32 %v310, 7
    %v312 = vsub.s32 0, %v311
    %v313 = vrot.slane %v308, %v312
    %v315 = vmul.f32 %v306, %v313
    %v316 = vmul.f32 %v307, %v313
    %v317 = vsel %vm84, %v315, 0.0
    %318 = vadd.xlane.f32.xlu0 %v317
    %v319 = vpop.xlane.xlu0 %318
    %v320 = vsel %vm84, %v316, 0.0
    %321 = vadd.xlane.f32.xlu0 %v320
    %v322 = vpop.xlane.xlu0 %321
    %v325 = vlaneseq
    %v326 = vshrl.u32 %v325, 7
    %v327 = vsub.s32 %v162, %v326
    %v328 = vrot.slane %v319, %v327
    %v329 = vlaneseq
    %v330 = vshrl.u32 %v329, 7
    %v331 = vsub.s32 %v162, %v330
    %v332 = vrot.slane %v322, %v331
    %vm333 = vcmask 1041409
    %v334 = vsel %vm333, %v332, %v328
    %vm336 = vcmask 58368
    %v337 = vsel %vm336, %v334, -inf
    %338 = vmax.xlane.f32.xlu0 %v337
    %v339 = vpop.xlane.xlu0 %338
    %v341 = vlaneseq
    %v342 = vshrl.u32 %v341, 7
    %v343 = vsub.s32 0, %v342
    %v344 = vrot.slane %v339, %v343
    %v345 = vlaneseq
    %v346 = vshrl.u32 %v345, 7
    %v347 = vsub.s32 1, %v346
    %v348 = vrot.slane %v339, %v347
    %v351 = vsub.f32 %v319, %v344
    %v352 = vsub.f32 %v322, %v348
    %v353 = vmul.f32 %v351, 1.442695
    %v354 = vpow.pop %v353
    %v355 = vmul.f32 %v352, 1.442695
    %v356 = vpow.pop %v355
    %359 = vset.pattern.permute.xlu0 0
    %360 = vperm.xlu0 %359, %v354
    %v361 = vpop.permute.xlu0 %360
    %362 = vset.pattern.permute.xlu0 0
    %363 = vperm.xlu0 %362, %v356
    %v364 = vpop.permute.xlu0 %363
    %v365 = vlaneseq
    %v366 = vshrl.u32 %v365, 7
    %v367 = vsub.s32 %v162, %v366
    %v368 = vrot.slane %v361, %v367
    %v369 = vlaneseq
    %v370 = vshrl.u32 %v369, 7
    %v371 = vsub.s32 %v162, %v370
    %v372 = vrot.slane %v364, %v371
    %v373 = vsel %vm333, %v372, %v368
    %v375 = vsel %vm336, %v373, 0.0
    %376 = vadd.xlane.f32.xlu0 %v375
    %v377 = vpop.xlane.xlu0 %376
    %v378 = vrcp.pop %v377
    %v380 = vlaneseq
    %v381 = vshrl.u32 %v380, 7
    %v382 = vsub.s32 0, %v381
    %v383 = vrot.slane %v378, %v382
    %v384 = vlaneseq
    %v385 = vshrl.u32 %v384, 7
    %v386 = vsub.s32 1, %v385
    %v387 = vrot.slane %v378, %v386
    %v390 = vmul.f32 %v354, %v383
    %v391 = vmul.f32 %v356, %v387
    %394 = vset.pattern.permute.xlu0 0
    %395 = vperm.xlu0 %394, %v390
    %v396 = vpop.permute.xlu0 %395
    %397 = vset.pattern.permute.xlu0 0
    %398 = vperm.xlu0 %397, %v391
    %v399 = vpop.permute.xlu0 %398
    %v400 = vlaneseq
    %v401 = vshrl.u32 %v400, 7
    %v402 = vsub.s32 %v162, %v401
    %v403 = vrot.slane %v396, %v402
    %v404 = vlaneseq
    %v405 = vshrl.u32 %v404, 7
    %v406 = vsub.s32 %v162, %v405
    %v407 = vrot.slane %v399, %v406
    %v408 = vsel %vm333, %v407, %v403
    %410 = vst.msk [vmem:[#allocation8] sm:$0x3] %vm336, %v408
    // Predicated region
    $region38: #{tpu_custom_call.1} parent=1 // pred_check
      _
    $region39: #{tpu_custom_call.1} parent=1 // pred_check_branch
      %412 = sbr.rel (0) target = $region41
    $region40: #{tpu_custom_call.1} parent=1 // pred_region
      %s414 = ssub.s32 32, 32
      %415 = vsyncadd [#allocation4], %s414
      %s417 = sshll.u32 [#allocation8], 4
      %s418 = int_to_ptr.vmem [resolvable:$true] %s417
      %420 = dma.vmem_to_hbm [thread:$0]  %s418, 32, %s6, [#allocation4]
    $region41: #{tpu_custom_call.1} parent=1 // pred_fallthru
      _
    // Predicated region
    $region42: #{tpu_custom_call.1} parent=1 // pred_check
      _
    $region43: #{tpu_custom_call.1} parent=1 // pred_check_branch
      %422 = sbr.rel (0) target = $region45
    $region44: #{tpu_custom_call.1} parent=1 // pred_region
      %423 = dma.done [#allocation4], 32
    $region45: #{tpu_custom_call.1} parent=1 // pred_fallthru
      _
    %424 = vsyncpa [#allocation3], 1
    %425 = vsyncpa [#allocation6], 1
    %426 = vsyncpa [#allocation4], 1

</llo_original>
